<compile_context>
chip_gen: v7x
topology: tpu7x:2x2x1
jax: 0.10.0
libtpu: 0.0.40
codegen_flags: <defaults>
</compile_context>

<pallas_src>
import jax
import jax.numpy as jnp
from jax.experimental import pallas as pl
from jax.experimental.pallas import tpu as pltpu


def _exp_kernel(x_ref, o_ref):
    # Pure elementwise exp on the current VMEM tile (EUP transcendental).
    o_ref[...] = jnp.exp(x_ref[...])


_MAX_LANE = 4096                 # widest lane axis we fold into (lane-dense vst)
_BLOCK_BYTES = 4 * 1024 * 1024   # per-block budget; 4 bufs x 4 MiB = 16 MiB VMEM
_SMALL_BYTES = 2 * 1024 * 1024   # at/under this: one gridless VMEM block
_VMEM_LIMIT = 32 * 1024 * 1024   # safe on v5e/v6e/v7x


def _exp_2d(x2: jax.Array) -> jax.Array:
    """Run the exp kernel on a 2D array, tiling over rows when worthwhile."""
    r, c = x2.shape
    nbytes = x2.size * x2.dtype.itemsize

    if nbytes <= _SMALL_BYTES or r < 16:
        # Small input: whole array in one VMEM block, no grid / pipeline
        # bookkeeping.
        return pl.pallas_call(
            _exp_kernel,
            out_shape=jax.ShapeDtypeStruct((r, c), x2.dtype),
        )(x2)

    # Row-tile size: as many rows as fit the per-block byte budget, rounded to
    # a sublane-friendly multiple (8 always legal; 32 covers packed dtypes).
    rows_budget = max(_BLOCK_BYTES // (c * x2.dtype.itemsize), 8)
    tb = min(rows_budget, r)
    tb = max((tb // 8) * 8, 8)
    if tb >= 32:
        tb = (tb // 32) * 32

    return pl.pallas_call(
        _exp_kernel,
        out_shape=jax.ShapeDtypeStruct((r, c), x2.dtype),
        grid=(pl.cdiv(r, tb),),
        in_specs=[pl.BlockSpec((tb, c), lambda i: (i, 0))],
        out_specs=pl.BlockSpec((tb, c), lambda i: (i, 0)),
        compiler_params=pltpu.CompilerParams(
            dimension_semantics=("parallel",),
            vmem_limit_bytes=_VMEM_LIMIT,
        ),
    )(x2)


def exp_layer(x: jax.Array) -> jax.Array:
    """Pallas equivalent of ExpLayer.forward: exp(x), elementwise."""
    orig_shape = x.shape
    n = x.size
    if n == 0:
        return x

    # Pick a lane-dense 2D view.  exp is elementwise, so flattening and
    # re-folding is free (row-major reshape) and lets us present a wide
    # 128-multiple lane axis regardless of the original trailing dim.
    if n % 128 == 0:
        width = 128
        while width * 2 <= _MAX_LANE and n % (width * 2) == 0:
            width *= 2
        x2 = x.reshape(n // width, width)
    elif x.ndim >= 2:
        x2 = x.reshape(-1, orig_shape[-1])
    else:
        x2 = x.reshape(1, -1)

    out2 = _exp_2d(x2)
    return out2.reshape(orig_shape)


if __name__ == "__main__":
    key = jax.random.PRNGKey(0)

    # Small shape consistent with the module (batch=2, hidden=32).
    x_small = jax.random.normal(key, (2, 32), dtype=jnp.float32)
    out_small = jax.block_until_ready(exp_layer(x_small))
    ref_small = jnp.exp(x_small)
    assert out_small.shape == x_small.shape, out_small.shape
    assert jnp.allclose(out_small, ref_small, rtol=1e-6, atol=1e-6), \
        "mismatch vs jnp.exp (small)"

    # Larger input to exercise the lane-dense fold + tiled pipelined path.
    key2 = jax.random.PRNGKey(0)
    x_big = jax.random.normal(key2, (4096, 512), dtype=jnp.float32)
    out_big = jax.block_until_ready(exp_layer(x_big))
    ref_big = jnp.exp(x_big)
    assert out_big.shape == x_big.shape, out_big.shape
    assert jnp.allclose(out_big, ref_big, rtol=1e-6, atol=1e-6), \
        "mismatch vs jnp.exp (tiled)"

    # Odd trailing dim / 3-D input hits the fallback reshape path.
    key3 = jax.random.PRNGKey(0)
    x_odd = jax.random.normal(key3, (2, 8, 33), dtype=jnp.float32)
    out_odd = jax.block_until_ready(exp_layer(x_odd))
    assert jnp.allclose(out_odd, jnp.exp(x_odd), rtol=1e-6, atol=1e-6), \
        "mismatch vs jnp.exp (odd shape)"

    print("KERNEL_OK")
</pallas_src>

<mosaic_0001>
module attributes {stable_mosaic.version = 11 : i64} {
  func.func @_exp_kernel(%arg0: memref<2x32xf32, #tpu.memory_space<vmem>>, %arg1: memref<2x32xf32, #tpu.memory_space<vmem>>) attributes {dimension_semantics = [], scalar_prefetch = 0 : i64, scratch_operands = 0 : i64, tpu.core_type = #tpu.core_type<tc>} {
    %c0 = arith.constant 0 : index
    %c0_0 = arith.constant 0 : index
    %0 = vector.load %arg0[%c0, %c0_0] : memref<2x32xf32, #tpu.memory_space<vmem>>, vector<2x32xf32>
    %1 = math.exp %0 : vector<2x32xf32>
    %c0_1 = arith.constant 0 : index
    %c0_2 = arith.constant 0 : index
    %2 = vector.load %arg1[%c0_1, %c0_2] : memref<2x32xf32, #tpu.memory_space<vmem>>, vector<2x32xf32>
    tpu.vector_store %arg1[%c0_1, %c0_2], %1 {strides = array<i32>} : memref<2x32xf32, #tpu.memory_space<vmem>>, vector<2x32xf32>,
    return
  }
}

</mosaic_0001>

<llo_original>
// kernel: tpu_custom_call.1
$region0: #{tpu_custom_call.1}
  #allocation0 [shape = 'u32[]', space=smem, size = 0x4, offset = 0x4, fixed_abs, tag = 'smem constant byte address 0x4 - core index']
  #allocation1 [shape = 'u32[144,128]{1,0:T(1,128)}', space=vmem, size = 0x12000, scoped, tag = 'internal scratch']
  %s0 = inlined_call_operand.hbm [shape: f32[2,32], index: 0, kind: input, shape index: {}]
  %s1 = inlined_call_operand.hbm [shape: f32[2,32], index: 1, kind: output, shape index: {}]
  %s2 = sld [smem:[#allocation0]]
  $region18: #{tpu_custom_call.1} parent=0
    _
  %s4 = ssub.s32 1, %s2
  %s5 = scalar_select 0, %s4, %s2
  $region1: #{tpu_custom_call.1} parent=0
    #allocation2 [shape = 'u8[1024]{0}', space=vmem, size = 0x400, scoped, tag = 'input window, operand 0, single buffered']
    #allocation3 [shape = 's32[1]{0}', space=sflag, size = 0x4, scoped, tag = 'scoped memory for tpu_custom_call.1']
    #allocation4 [shape = 's32[1]{0}', space=sflag, size = 0x4, scoped, tag = 'scoped memory for tpu_custom_call.1']
    #allocation5 [shape = 'u8[1024]{0}', space=vmem, size = 0x400, scoped, tag = 'output window, operand 0, single buffered']
    %6 = vsyncpa [#allocation3], 0
    %7 = vsyncpa [#allocation4], 0
    // Predicated region
    $region2: #{tpu_custom_call.1} parent=1 // pred_check
      _
    $region3: #{tpu_custom_call.1} parent=1 // pred_check_branch
      %9 = sbr.rel (0) target = $region5
    $region4: #{tpu_custom_call.1} parent=1 // pred_region
      %s11 = ssub.s32 32, 32
      %12 = vsyncadd [#allocation3], %s11
      %s14 = sshll.u32 [#allocation2], 4
      %s15 = int_to_ptr.vmem [resolvable:$true] %s14
      %17 = dma.hbm_to_vmem [thread:$0]  %s0, 32, %s15, [#allocation3]
    $region5: #{tpu_custom_call.1} parent=1 // pred_fallthru
      _
    // Predicated region
    $region6: #{tpu_custom_call.1} parent=1 // pred_check
      _
    $region7: #{tpu_custom_call.1} parent=1 // pred_check_branch
      %19 = sbr.rel (0) target = $region9
    $region8: #{tpu_custom_call.1} parent=1 // pred_region
      %20 = dma.done [#allocation3], 32
    $region9: #{tpu_custom_call.1} parent=1 // pred_fallthru
      _
    %v21 = vld [vmem:[#allocation2] sm:$0x3]
    %v22 = vmul.f32 %v21, 1.442695
    %v23 = vpow.pop %v22
    %vm24 = vcmask 254976
    %25 = vst.msk [vmem:[#allocation5] sm:$0x3] %vm24, %v23
    // Predicated region
    $region10: #{tpu_custom_call.1} parent=1 // pred_check
      _
    $region11: #{tpu_custom_call.1} parent=1 // pred_check_branch
      %27 = sbr.rel (0) target = $region13
    $region12: #{tpu_custom_call.1} parent=1 // pred_region
      %s29 = ssub.s32 32, 32
      %30 = vsyncadd [#allocation4], %s29
      %s32 = sshll.u32 [#allocation5], 4
      %s33 = int_to_ptr.vmem [resolvable:$true] %s32
      %35 = dma.vmem_to_hbm [thread:$0]  %s33, 32, %s1, [#allocation4]
    $region13: #{tpu_custom_call.1} parent=1 // pred_fallthru
      _
    // Predicated region
    $region14: #{tpu_custom_call.1} parent=1 // pred_check
      _
    $region15: #{tpu_custom_call.1} parent=1 // pred_check_branch
      %37 = sbr.rel (0) target = $region17
    $region16: #{tpu_custom_call.1} parent=1 // pred_region
      %38 = dma.done [#allocation4], 32
    $region17: #{tpu_custom_call.1} parent=1 // pred_fallthru
      _
    %39 = vsyncpa [#allocation3], 1
    %40 = vsyncpa [#allocation4], 1

</llo_original>
